<compile_context>
chip_gen: v5e
topology: v5e:2x2
jax: 0.10.0
libtpu: 0.0.40
codegen_flags: <defaults>
</compile_context>

<pallas_src>
import jax
import jax.numpy as jnp
from jax.experimental import pallas as pl
from jax.experimental.pallas import tpu as pltpu


def _margins_kernel(p_ref, o_ref):
    # p_ref: SMEM f32[2] holding [m1, m2]; o_ref: SMEM f32[2] (aliased to p_ref).
    # Read both scalars BEFORE writing, so the in/out aliasing is safe.
    m1 = p_ref[0]
    m2 = p_ref[1]
    # clamp(m1, min=0)
    o_ref[0] = jnp.maximum(m1, jnp.float32(0.0))
    # clamp(m2, min=m1 + 0.1) -- uses the *raw* (unclamped) m1, as in PyTorch.
    o_ref[1] = jnp.maximum(m2, m1 + jnp.float32(0.1))


@jax.jit
def learnable_margins_forward(params):
    """JAX wrapper reproducing LearnableMargins.forward().

    Args:
      params: f32[2] packed parameter vector [m1, m2] (kept packed so the
              caller never pays for stack/slice ops around the custom call).
    Returns:
      f32[2] packed [clamp(m1, min=0), clamp(m2, min=m1 + 0.1)].
    """
    return pl.pallas_call(
        _margins_kernel,
        out_shape=jax.ShapeDtypeStruct((2,), jnp.float32),
        in_specs=[pl.BlockSpec(memory_space=pltpu.SMEM)],
        out_specs=pl.BlockSpec(memory_space=pltpu.SMEM),
        input_output_aliases={0: 0},
    )(params)


if __name__ == "__main__":
    # Deterministic parameter construction: module defaults (m1=0.0, m2=0.6)
    # perturbed with PRNGKey(0) so both clamps are actually exercised.
    key = jax.random.PRNGKey(0)
    init = jnp.array([0.0, 0.6], dtype=jnp.float32)
    params = init + jax.random.normal(key, (2,), dtype=jnp.float32) * 0.5

    # Pure-JAX reference (computed before the call; robust even under donation).
    ref = jnp.stack(
        [jnp.maximum(params[0], 0.0), jnp.maximum(params[1], params[0] + 0.1)]
    )

    out = learnable_margins_forward(params)
    jax.block_until_ready(out)

    assert out.shape == (2,) and out.dtype == jnp.float32, (out.shape, out.dtype)
    assert jnp.allclose(out, ref, atol=1e-6), (out, ref)

    print("KERNEL_OK")
</pallas_src>

<mosaic_0001>
module attributes {stable_mosaic.version = 11 : i64} {
  func.func @_margins_kernel(%arg0: memref<2xf32, #tpu.memory_space<smem>>, %arg1: memref<2xf32, #tpu.memory_space<smem>>) attributes {dimension_semantics = [], scalar_prefetch = 0 : i64, scratch_operands = 0 : i64, tpu.core_type = #tpu.core_type<tc>} {
    %c0 = arith.constant 0 : index
    %0 = memref.load %arg0[%c0] : memref<2xf32, #tpu.memory_space<smem>>
    %c1 = arith.constant 1 : index
    %1 = memref.load %arg0[%c1] : memref<2xf32, #tpu.memory_space<smem>>
    %cst = arith.constant 0.000000e+00 : f32
    %2 = arith.maximumf %0, %cst : f32
    %c0_0 = arith.constant 0 : index
    %3 = memref.load %arg1[%c0_0] : memref<2xf32, #tpu.memory_space<smem>>
    memref.store %2, %arg1[%c0_0] : memref<2xf32, #tpu.memory_space<smem>>
    %cst_1 = arith.constant 1.000000e-01 : f32
    %4 = arith.addf %0, %cst_1 : f32
    %5 = arith.maximumf %1, %4 : f32
    %c1_2 = arith.constant 1 : index
    %6 = memref.load %arg1[%c1_2] : memref<2xf32, #tpu.memory_space<smem>>
    memref.store %5, %arg1[%c1_2] : memref<2xf32, #tpu.memory_space<smem>>
    return
  }
}

</mosaic_0001>

<llo_original>
// kernel: learnable_margins_forward.1
$region0: #{learnable_margins_forward.1}
  #allocation0 [shape = 'u32[]', space=smem, size = 0x4, offset = 0x4, fixed_abs, tag = 'smem constant byte address 0x4 - core index']
  #allocation1 [shape = 'u32[72,128]{1,0:T(1,128)}', space=vmem, size = 0x9000, scoped, tag = 'internal scratch']
  %s0 = inlined_call_operand.hbm [shape: f32[2], index: 0, kind: input, shape index: {}, may-alias: {0,1}]
  %s1 = inlined_call_operand.hbm [shape: f32[2], index: 1, kind: output, shape index: {}, may-alias: {0,1}]
  %s2 = sld [smem:[#allocation0]]
  $region18: #{learnable_margins_forward.1} parent=0
    _
  %s4 = ssub.s32 1, %s2
  %s5 = scalar_select 0, %s4, %s2
  $region1: #{learnable_margins_forward.1} parent=0
    #allocation2 [shape = 'u8[512]{0}', space=smem, size = 0x200, scoped, tag = 'input window, operand 0, single buffered']
    #allocation3 [shape = 's32[1]{0}', space=sflag, size = 0x4, scoped, tag = 'scoped memory for learnable_margins_forward.1']
    #allocation4 [shape = 's32[1]{0}', space=sflag, size = 0x4, scoped, tag = 'scoped memory for learnable_margins_forward.1']
    #allocation5 [shape = 'u8[512]{0}', space=smem, size = 0x200, scoped, tag = 'output window, operand 0, single buffered']
    %6 = vsyncpa [#allocation3], 0
    %7 = vsyncpa [#allocation4], 0
    // Predicated region
    $region2: #{learnable_margins_forward.1} parent=1 // pred_check
      _
    $region3: #{learnable_margins_forward.1} parent=1 // pred_check_branch
      %9 = sbr.rel (0) target = $region5
    $region4: #{learnable_margins_forward.1} parent=1 // pred_region
      %11 = vsyncadd [#allocation3], 0
      %s13 = sshll.u32 %s0, 4
      %s14 = int_to_ptr.hbm [resolvable:$true] %s13
      %16 = dma.hbm_to_smem %s14, 16, [#allocation2], [#allocation3]
    $region5: #{learnable_margins_forward.1} parent=1 // pred_fallthru
      _
    // Predicated region
    $region6: #{learnable_margins_forward.1} parent=1 // pred_check
      _
    $region7: #{learnable_margins_forward.1} parent=1 // pred_check_branch
      %18 = sbr.rel (0) target = $region9
    $region8: #{learnable_margins_forward.1} parent=1 // pred_region
      %20 = dma.done [#allocation3], 16
    $region9: #{learnable_margins_forward.1} parent=1 // pred_fallthru
      _
    %21 = sfence
    %s22 = sld [smem:[#allocation2]]
    %s23 = sld [smem:[#allocation2 + $0x1]]
    %s24 = smax.f32 %s22, 0.0
    %s25 = scalar_lea.smem [#allocation5], 0
    %26 = sst [smem:[%s25]] %s24
    %s27 = sadd.f32 %s22, 0.1
    %s28 = smax.f32 %s23, %s27
    %s29 = scalar_lea.smem [#allocation5], 1
    %30 = sst [smem:[%s29]] %s28
    // Predicated region
    $region10: #{learnable_margins_forward.1} parent=1 // pred_check
      _
    $region11: #{learnable_margins_forward.1} parent=1 // pred_check_branch
      %32 = sbr.rel (0) target = $region13
    $region12: #{learnable_margins_forward.1} parent=1 // pred_region
      %34 = vsyncadd [#allocation4], 0
      %s36 = sshll.u32 %s1, 4
      %s37 = int_to_ptr.hbm [resolvable:$true] %s36
      %39 = dma.smem_to_hbm [#allocation5], 16, %s37, [#allocation4]
    $region13: #{learnable_margins_forward.1} parent=1 // pred_fallthru
      _
    // Predicated region
    $region14: #{learnable_margins_forward.1} parent=1 // pred_check
      _
    $region15: #{learnable_margins_forward.1} parent=1 // pred_check_branch
      %41 = sbr.rel (0) target = $region17
    $region16: #{learnable_margins_forward.1} parent=1 // pred_region
      %43 = dma.done [#allocation4], 16
    $region17: #{learnable_margins_forward.1} parent=1 // pred_fallthru
      _
    %44 = sfence
    %45 = vsyncpa [#allocation3], 1
    %46 = vsyncpa [#allocation4], 1

</llo_original>
